<compile_context>
chip_gen: v7x
topology: tpu7x:2x2x1
jax: 0.10.0
libtpu: 0.0.40
codegen_flags: <defaults>
</compile_context>

<pallas_src>
import functools

import jax
import jax.numpy as jnp
from jax.experimental import pallas as pl
from jax.experimental.pallas import tpu as pltpu


def _round_up(x, m):
    return ((x + m - 1) // m) * m


def _vmem_limit_bytes():
    """Generation-aware VMEM limit with headroom (48 MiB on v7x, 96 MiB on v5e/v6e)."""
    cap = 64 * 1024 * 1024  # conservative default = v7x per-TensorCore VMEM
    try:
        cap = int(getattr(pltpu.get_tpu_info(), "vmem_capacity_bytes", cap))
    except Exception:
        pass
    return max(32 * 1024 * 1024, min(cap - 16 * 1024 * 1024, 96 * 1024 * 1024))


# ---------------------------------------------------------------------------
# Tiled MXU matmul kernel: C = A @ B (+ bias).  f32 accumulation directly in
# the output block (VMEM-resident across the innermost k axis -> no scratch).
# ---------------------------------------------------------------------------
def _mm_kernel(a_ref, b_ref, o_ref):
    @pl.when(pl.program_id(2) == 0)
    def _():
        o_ref[...] = jnp.zeros_like(o_ref)

    o_ref[...] += jnp.dot(a_ref[...], b_ref[...],
                          preferred_element_type=jnp.float32)


def _mm_bias_kernel(a_ref, b_ref, bias_ref, o_ref):
    @pl.when(pl.program_id(2) == 0)
    def _():
        o_ref[...] = jnp.broadcast_to(bias_ref[...], o_ref.shape)

    o_ref[...] += jnp.dot(a_ref[...], b_ref[...],
                          preferred_element_type=jnp.float32)


def _blk(dim, tile):
    """Pick a block size that DIVIDES `dim` (no re-padding); pad only as a last resort."""
    if dim <= tile:
        return dim, dim                       # full-dim block (exemption), no padding
    c = tile
    while c >= 128:
        if dim % c == 0:
            return c, dim
        c //= 2
    return tile, _round_up(dim, tile)         # last resort: costs one HBM pad copy


def pallas_matmul(a, b, bias=None, *, tm=512, tn=512, tk=512):
    """C = A @ B (+ bias), f32 accumulation on the MXU, tiled over (M, N, K)."""
    M, K = a.shape
    K2, N = b.shape
    assert K == K2, (a.shape, b.shape)

    bm, m_pad = _blk(M, tm)
    bk, k_pad = _blk(K, tk)
    bn, n_pad = _blk(N, tn)

    if (m_pad, k_pad) != (M, K):
        a = jnp.pad(a, ((0, m_pad - M), (0, k_pad - K)))
    if (k_pad, n_pad) != (K, N):
        b = jnp.pad(b, ((0, k_pad - K), (0, n_pad - N)))

    in_specs = [
        pl.BlockSpec((bm, bk), lambda i, j, k: (i, k)),
        pl.BlockSpec((bk, bn), lambda i, j, k: (k, j)),
    ]
    args = [a, b]
    if bias is not None:
        bias2 = bias.astype(jnp.float32).reshape(1, N)
        if n_pad != N:
            bias2 = jnp.pad(bias2, ((0, 0), (0, n_pad - N)))
        in_specs.append(pl.BlockSpec((1, bn), lambda i, j, k: (0, j)))
        args.append(bias2)
        kernel = _mm_bias_kernel
    else:
        kernel = _mm_kernel

    out = pl.pallas_call(
        kernel,
        out_shape=jax.ShapeDtypeStruct((m_pad, n_pad), jnp.float32),
        grid_spec=pltpu.PrefetchScalarGridSpec(
            num_scalar_prefetch=0,
            grid=(m_pad // bm, n_pad // bn, k_pad // bk),
            in_specs=in_specs,
            out_specs=pl.BlockSpec((bm, bn), lambda i, j, k: (i, j)),
        ),
        compiler_params=pltpu.CompilerParams(
            dimension_semantics=("parallel", "parallel", "arbitrary"),
            vmem_limit_bytes=_vmem_limit_bytes(),
        ),
    )(*args)

    if (m_pad, n_pad) != (M, N):
        out = out[:M, :N]
    return out


# ---------------------------------------------------------------------------
# Fused random-walk powers + Linear(ksteps -> emb_dim) projection.
#
# One grid step handles one (meta-path p, row-block i):
#   * T for path p is VMEM-resident across all row blocks of that path
#     (block index constant along the inner grid axis -> fetched once per path),
#   * powers T^0..T^(ksteps-1) of the row block live in a VMEM scratch,
#     one MXU matmul each, never written to HBM,
#   * the projection accumulates directly into the lane-dense output block
#     out[p, e, rows, :] (node axis on lanes -> unmasked stores),
#   * projection weights / bias are scalar-prefetched into SMEM.
# ---------------------------------------------------------------------------
def _fused_power_proj_kernel(w_smem, b_smem, t_ref, o_ref, pows_ref, *,
                             ksteps, emb_dim, bm):
    p = pl.program_id(0)
    n_al = t_ref.shape[-1]
    row0 = pl.multiple_of(pl.program_id(1) * bm, bm)

    # ---- phase 1: random-walk powers of this row block (MXU) ----------------
    cols = jax.lax.broadcasted_iota(jnp.int32, (bm, n_al), 1)
    rows = jax.lax.broadcasted_iota(jnp.int32, (bm, n_al), 0) + row0
    pows_ref[0] = (cols == rows).astype(jnp.float32)            # T^0 = I
    if ksteps > 1:
        pows_ref[1] = t_ref[pl.ds(row0, bm), :]                  # T^1 row block
    for k in range(2, ksteps):
        pows_ref[k] = jnp.dot(pows_ref[k - 1], t_ref[...],
                              preferred_element_type=jnp.float32)

    # ---- phase 2: fused Linear(ksteps -> emb_dim), lane-dense stores --------
    # SMEM layout: w_smem[(p*ksteps + k)*emb_dim + e] = W_p[e, k]
    w_base = p * (ksteps * emb_dim)
    b_base = p * emb_dim

    def _proj_one_channel(e, carry):
        acc = jnp.full((bm, n_al), b_smem[b_base + e], dtype=jnp.float32)
        for k in range(ksteps):                                  # static unroll
            acc = acc + w_smem[w_base + k * emb_dim + e] * pows_ref[k]
        o_ref[e] = acc
        return carry

    jax.lax.fori_loop(0, emb_dim, _proj_one_channel, 0)


def _choose_row_block(n_al, emb_dim, ksteps, budget_bytes):
    """Largest row-block that keeps resident-T + blocks inside the VMEM budget."""
    t_bytes = 2 * n_al * n_al * 4            # resident T (double-buffered)
    cands = ([n_al] if n_al <= 512 else []) + \
            [c for c in (512, 256, 128, 64, 32, 16, 8) if c < n_al and n_al % c == 0]
    for bm in cands:
        out_bytes = 2 * emb_dim * bm * n_al * 4   # double-buffered output block
        pow_bytes = ksteps * bm * n_al * 4        # powers scratch
        if t_bytes + out_bytes + pow_bytes <= budget_bytes:
            return bm
    return None                               # T too big to keep VMEM-resident


def fused_power_projection(t_all, w_flat, b_flat, *, ksteps, emb_dim, bm):
    num_paths, n_al, _ = t_all.shape
    kernel = functools.partial(_fused_power_proj_kernel,
                               ksteps=ksteps, emb_dim=emb_dim, bm=bm)
    return pl.pallas_call(
        kernel,
        out_shape=jax.ShapeDtypeStruct((num_paths, emb_dim, n_al, n_al),
                                       jnp.float32),
        grid_spec=pltpu.PrefetchScalarGridSpec(
            num_scalar_prefetch=2,                      # w_flat, b_flat -> SMEM
            grid=(num_paths, n_al // bm),
            in_specs=[pl.BlockSpec((None, n_al, n_al),
                                   lambda p, i, *_: (p, 0, 0))],
            out_specs=pl.BlockSpec((None, emb_dim, bm, n_al),
                                   lambda p, i, *_: (p, 0, i, 0)),
            scratch_shapes=[pltpu.VMEM((ksteps, bm, n_al), jnp.float32)],
        ),
        compiler_params=pltpu.CompilerParams(
            dimension_semantics=("parallel", "parallel"),
            vmem_limit_bytes=_vmem_limit_bytes(),
        ),
    )(w_flat, b_flat, t_all)


# ---------------------------------------------------------------------------
# MetaPathRRWPEncoder forward
# ---------------------------------------------------------------------------
_NODE_ALIGN = 128   # lane alignment, coupled to pallas_matmul's minimum block size


def _align_nodes(num_nodes):
    return num_nodes if num_nodes <= _NODE_ALIGN else _round_up(num_nodes, _NODE_ALIGN)


@functools.partial(jax.jit, static_argnames=("num_nodes", "meta_paths", "ksteps"))
def metapath_rrwp_forward(edge_index, edge_type, weights, biases, *,
                          num_nodes, meta_paths, ksteps):
    """JAX/Pallas equivalent of MetaPathRRWPEncoder.forward.

    Returns [num_nodes, num_meta_paths, num_nodes, emb_dim].
    """
    num_paths = len(meta_paths)
    emb_dim = weights[0].shape[0]
    # Align the node dimension ONCE; everything below stays at n_al until the
    # single final slice (no per-power slicing, no per-call re-padding).
    n_al = _align_nodes(num_nodes)

    src, dst = edge_index[0], edge_index[1]

    # ---- per-meta-path transition matrices (dense adjacency chain) ----------
    # TODO(synk): edge-list -> dense adjacency scatter-add is data dependent and
    # stays in plain JAX; everything downstream runs through Pallas kernels.
    trans_list = []
    for meta_path in meta_paths:
        adjs = []
        for et in meta_path:
            w = (edge_type == et).astype(jnp.float32)
            adjs.append(jnp.zeros((n_al, n_al), jnp.float32).at[src, dst].add(w))
        trans = adjs[0]
        for adj in adjs[1:]:
            trans = pallas_matmul(trans, adj)            # chained MXU matmuls
        trans_list.append(trans)
    t_all = jnp.stack(trans_list, axis=0)                # [P, n_al, n_al]

    w_all = jnp.stack(weights, axis=0).astype(jnp.float32)   # [P, emb_dim, ksteps]
    b_all = jnp.stack(biases, axis=0).astype(jnp.float32)    # [P, emb_dim]

    budget = (_vmem_limit_bytes() * 3) // 4
    bm = _choose_row_block(n_al, emb_dim, ksteps, budget)

    if bm is not None:
        # Fused path: powers + projection in one kernel, T VMEM-resident,
        # meta-paths batched behind a leading "parallel" grid axis.
        w_flat = jnp.transpose(w_all, (0, 2, 1)).reshape(-1)   # (p,k,e) -> flat
        b_flat = b_all.reshape(-1)
        out_t = fused_power_projection(t_all, w_flat, b_flat,
                                       ksteps=ksteps, emb_dim=emb_dim, bm=bm)
        # [P, emb, n_al, n_al] -> [N, P, N, emb]; slice padded rows/cols once.
        return jnp.transpose(out_t, (2, 0, 3, 1))[:num_nodes, :, :num_nodes, :]

    # ---- large-graph fallback (T exceeds the VMEM residency budget) ---------
    # TODO(synk): k-streamed fused variant for n_al beyond the VMEM budget; for
    # now fall back to tiled matmuls + a separate large-M projection matmul.
    outs = []
    for p_idx in range(num_paths):
        trans = t_all[p_idx]
        powers = [jnp.eye(n_al, dtype=jnp.float32)]
        curr = trans
        for k in range(1, ksteps):
            powers.append(curr)
            if k + 1 < ksteps:
                curr = pallas_matmul(curr, trans)
        p_flat = jnp.stack(powers, axis=-1).reshape(n_al * n_al, ksteps)
        proj = pallas_matmul(p_flat, jnp.transpose(w_all[p_idx]),
                             bias=b_all[p_idx], tm=4096)
        outs.append(proj.reshape(n_al, n_al, emb_dim))
    out = jnp.stack(outs, axis=1)                        # [n_al, P, n_al, emb]
    return out[:num_nodes, :, :num_nodes, :]


# ---------------------------------------------------------------------------
# Pure-JAX reference (mirrors the PyTorch module exactly)
# ---------------------------------------------------------------------------
def _reference_forward(edge_index, edge_type, weights, biases, *,
                       num_nodes, meta_paths, ksteps):
    src, dst = edge_index[0], edge_index[1]
    outs = []
    for path_idx, meta_path in enumerate(meta_paths):
        adjs = []
        for et in meta_path:
            w = (edge_type == et).astype(jnp.float32)
            adjs.append(
                jnp.zeros((num_nodes, num_nodes), jnp.float32).at[src, dst].add(w))
        trans = adjs[0]
        for adj in adjs[1:]:
            trans = trans @ adj
        powers = [jnp.eye(num_nodes, dtype=jnp.float32)]
        curr = trans
        for _ in range(ksteps - 1):
            powers.append(curr)
            curr = curr @ trans
        p = jnp.stack(powers, axis=-1)                         # [N, N, K]
        out = jnp.einsum("ijk,ek->ije", p, weights[path_idx]) + biases[path_idx]
        outs.append(out)
    return jnp.stack(outs, axis=1)


if __name__ == "__main__":
    key = jax.random.PRNGKey(0)
    k_ei, k_et, kw0, kb0, kw1, kb1 = jax.random.split(key, 6)

    num_nodes = 16
    num_edges = 64
    num_edge_types = 3
    meta_paths = ((0, 1), (1, 2))     # two meta-paths, each of length 2
    ksteps = 4
    emb_dim = 32

    edge_index = jax.random.randint(k_ei, (2, num_edges), 0, num_nodes,
                                    dtype=jnp.int32)
    edge_type = jax.random.randint(k_et, (num_edges,), 0, num_edge_types,
                                   dtype=jnp.int32)

    weights = (
        0.1 * jax.random.normal(kw0, (emb_dim, ksteps), dtype=jnp.float32),
        0.1 * jax.random.normal(kw1, (emb_dim, ksteps), dtype=jnp.float32),
    )
    biases = (
        0.1 * jax.random.normal(kb0, (emb_dim,), dtype=jnp.float32),
        0.1 * jax.random.normal(kb1, (emb_dim,), dtype=jnp.float32),
    )

    out = metapath_rrwp_forward(edge_index, edge_type, weights, biases,
                                num_nodes=num_nodes, meta_paths=meta_paths,
                                ksteps=ksteps)
    out = jax.block_until_ready(out)

    ref = _reference_forward(edge_index, edge_type, weights, biases,
                             num_nodes=num_nodes, meta_paths=meta_paths,
                             ksteps=ksteps)

    assert out.shape == (num_nodes, len(meta_paths), num_nodes, emb_dim), out.shape
    assert jnp.allclose(out, ref, atol=1e-4, rtol=1e-4), \
        f"max abs diff {jnp.max(jnp.abs(out - ref))}"

    print("KERNEL_OK")
</pallas_src>

<mosaic_0001>
module attributes {stable_mosaic.version = 11 : i64} {
  func.func private @main(%arg0: i32) attributes {dimension_semantics = [#tpu.dimension_semantics<core_parallel>], iteration_bounds = array<i64: 2>, tpu.core_type = #tpu.core_type<sc_scalar_subcore>, window_params = []} {
    return
  }
}

module attributes {stable_mosaic.version = 11 : i64} {
  func.func private @main(%arg0: i32) attributes {dimension_semantics = [#tpu.dimension_semantics<core_parallel>], iteration_bounds = array<i64: 2>, tpu.core_type = #tpu.core_type<sc_scalar_subcore>, window_params = []} {
    return
  }
}

module attributes {stable_mosaic.version = 11 : i64} {
  func.func @_mm_kernel(%arg0: i32, %arg1: i32, %arg2: i32, %arg3: memref<16x16xf32, #tpu.memory_space<vmem>>, %arg4: memref<16x16xf32, #tpu.memory_space<vmem>>, %arg5: memref<16x16xf32, #tpu.memory_space<vmem>>) attributes {dimension_semantics = [#tpu.dimension_semantics<parallel>, #tpu.dimension_semantics<parallel>, #tpu.dimension_semantics<arbitrary>], iteration_bounds = array<i64: 1, 1, 1>, scalar_prefetch = 0 : i64, scratch_operands = 0 : i64, tpu.core_type = #tpu.core_type<tc>, window_params = [{transform_indices = @transform_0, window_bounds = array<i64: 16, 16>}, {transform_indices = @transform_1, window_bounds = array<i64: 16, 16>}, {transform_indices = @transform_2, window_bounds = array<i64: 16, 16>}]} {
    %c0_i32 = arith.constant 0 : i32
    %0 = arith.cmpi eq, %arg2, %c0_i32 : i32
    %1 = arith.extui %0 : i1 to i32
    %c0_i32_0 = arith.constant 0 : i32
    %2 = arith.cmpi ne, %1, %c0_i32_0 : i32
    scf.if %2 {
      %cst_8 = arith.constant 0.000000e+00 : f32
      %9 = vector.broadcast %cst_8 : f32 to vector<16x16xf32>
      %c0_9 = arith.constant 0 : index
      %c0_10 = arith.constant 0 : index
      %10 = vector.load %arg5[%c0_9, %c0_10] : memref<16x16xf32, #tpu.memory_space<vmem>>, vector<16x16xf32>
      tpu.vector_store %arg5[%c0_9, %c0_10], %9 {strides = array<i32>} : memref<16x16xf32, #tpu.memory_space<vmem>>, vector<16x16xf32>,
    } else {
    }
    %c0 = arith.constant 0 : index
    %c0_1 = arith.constant 0 : index
    %3 = vector.load %arg5[%c0, %c0_1] : memref<16x16xf32, #tpu.memory_space<vmem>>, vector<16x16xf32>
    %c0_2 = arith.constant 0 : index
    %c0_3 = arith.constant 0 : index
    %4 = vector.load %arg3[%c0_2, %c0_3] : memref<16x16xf32, #tpu.memory_space<vmem>>, vector<16x16xf32>
    %c0_4 = arith.constant 0 : index
    %c0_5 = arith.constant 0 : index
    %5 = vector.load %arg4[%c0_4, %c0_5] : memref<16x16xf32, #tpu.memory_space<vmem>>, vector<16x16xf32>
    %cst = arith.constant dense<0.000000e+00> : vector<16x16xf32>
    %6 = tpu.matmul %4, %5, %cst {dimension_numbers = #tpu.dot_dimension_numbers<[1], [0], [0], [1], [0, 0, 1, 1], [], []>} : vector<16x16xf32>, vector<16x16xf32>, vector<16x16xf32> -> vector<16x16xf32>
    %7 = arith.addf %3, %6 : vector<16x16xf32>
    %c0_6 = arith.constant 0 : index
    %c0_7 = arith.constant 0 : index
    %8 = vector.load %arg5[%c0_6, %c0_7] : memref<16x16xf32, #tpu.memory_space<vmem>>, vector<16x16xf32>
    tpu.vector_store %arg5[%c0_6, %c0_7], %7 {strides = array<i32>} : memref<16x16xf32, #tpu.memory_space<vmem>>, vector<16x16xf32>,
    return
  }
  func.func @transform_0(%arg0: i32, %arg1: i32, %arg2: i32) -> (i32, i32) {
    %c0_i32 = arith.constant 0 : i32
    return %arg0, %arg2 : i32, i32
  }
  func.func @transform_1(%arg0: i32, %arg1: i32, %arg2: i32) -> (i32, i32) {
    %c0_i32 = arith.constant 0 : i32
    return %arg2, %arg1 : i32, i32
  }
  func.func @transform_2(%arg0: i32, %arg1: i32, %arg2: i32) -> (i32, i32) {
    %c0_i32 = arith.constant 0 : i32
    return %arg0, %arg1 : i32, i32
  }
}

module attributes {stable_mosaic.version = 11 : i64} {
  func.func @_mm_kernel(%arg0: i32, %arg1: i32, %arg2: i32, %arg3: memref<16x16xf32, #tpu.memory_space<vmem>>, %arg4: memref<16x16xf32, #tpu.memory_space<vmem>>, %arg5: memref<16x16xf32, #tpu.memory_space<vmem>>) attributes {dimension_semantics = [#tpu.dimension_semantics<parallel>, #tpu.dimension_semantics<parallel>, #tpu.dimension_semantics<arbitrary>], iteration_bounds = array<i64: 1, 1, 1>, scalar_prefetch = 0 : i64, scratch_operands = 0 : i64, tpu.core_type = #tpu.core_type<tc>, window_params = [{transform_indices = @transform_0, window_bounds = array<i64: 16, 16>}, {transform_indices = @transform_1, window_bounds = array<i64: 16, 16>}, {transform_indices = @transform_2, window_bounds = array<i64: 16, 16>}]} {
    %c0_i32 = arith.constant 0 : i32
    %0 = arith.cmpi eq, %arg2, %c0_i32 : i32
    %1 = arith.extui %0 : i1 to i32
    %c0_i32_0 = arith.constant 0 : i32
    %2 = arith.cmpi ne, %1, %c0_i32_0 : i32
    scf.if %2 {
      %cst_8 = arith.constant 0.000000e+00 : f32
      %9 = vector.broadcast %cst_8 : f32 to vector<16x16xf32>
      %c0_9 = arith.constant 0 : index
      %c0_10 = arith.constant 0 : index
      %10 = vector.load %arg5[%c0_9, %c0_10] : memref<16x16xf32, #tpu.memory_space<vmem>>, vector<16x16xf32>
      tpu.vector_store %arg5[%c0_9, %c0_10], %9 {strides = array<i32>} : memref<16x16xf32, #tpu.memory_space<vmem>>, vector<16x16xf32>,
    } else {
    }
    %c0 = arith.constant 0 : index
    %c0_1 = arith.constant 0 : index
    %3 = vector.load %arg5[%c0, %c0_1] : memref<16x16xf32, #tpu.memory_space<vmem>>, vector<16x16xf32>
    %c0_2 = arith.constant 0 : index
    %c0_3 = arith.constant 0 : index
    %4 = vector.load %arg3[%c0_2, %c0_3] : memref<16x16xf32, #tpu.memory_space<vmem>>, vector<16x16xf32>
    %c0_4 = arith.constant 0 : index
    %c0_5 = arith.constant 0 : index
    %5 = vector.load %arg4[%c0_4, %c0_5] : memref<16x16xf32, #tpu.memory_space<vmem>>, vector<16x16xf32>
    %cst = arith.constant dense<0.000000e+00> : vector<16x16xf32>
    %6 = tpu.matmul %4, %5, %cst {dimension_numbers = #tpu.dot_dimension_numbers<[1], [0], [0], [1], [0, 0, 1, 1], [], []>} : vector<16x16xf32>, vector<16x16xf32>, vector<16x16xf32> -> vector<16x16xf32>
    %7 = arith.addf %3, %6 : vector<16x16xf32>
    %c0_6 = arith.constant 0 : index
    %c0_7 = arith.constant 0 : index
    %8 = vector.load %arg5[%c0_6, %c0_7] : memref<16x16xf32, #tpu.memory_space<vmem>>, vector<16x16xf32>
    tpu.vector_store %arg5[%c0_6, %c0_7], %7 {strides = array<i32>} : memref<16x16xf32, #tpu.memory_space<vmem>>, vector<16x16xf32>,
    return
  }
  func.func @transform_0(%arg0: i32, %arg1: i32, %arg2: i32) -> (i32, i32) {
    %c0_i32 = arith.constant 0 : i32
    return %arg0, %arg2 : i32, i32
  }
  func.func @transform_1(%arg0: i32, %arg1: i32, %arg2: i32) -> (i32, i32) {
    %c0_i32 = arith.constant 0 : i32
    return %arg2, %arg1 : i32, i32
  }
  func.func @transform_2(%arg0: i32, %arg1: i32, %arg2: i32) -> (i32, i32) {
    %c0_i32 = arith.constant 0 : i32
    return %arg0, %arg1 : i32, i32
  }
}

module attributes {stable_mosaic.version = 11 : i64} {
  func.func @_fused_power_proj_kernel(%arg0: i32, %arg1: i32, %arg2: memref<256xf32, #tpu.memory_space<smem>>, %arg3: memref<64xf32, #tpu.memory_space<smem>>, %arg4: memref<1x16x16xf32, #tpu.memory_space<vmem>>, %arg5: memref<1x32x16x16xf32, #tpu.memory_space<vmem>>, %arg6: memref<4x16x16xf32, #tpu.memory_space<vmem>>) attributes {dimension_semantics = [#tpu.dimension_semantics<parallel>, #tpu.dimension_semantics<parallel>], iteration_bounds = array<i64: 2, 1>, scalar_prefetch = 2 : i64, scratch_operands = 1 : i64, tpu.core_type = #tpu.core_type<tc>, window_params = [{transform_indices = @transform_0, window_bounds = array<i64: 1, 16, 16>}, {transform_indices = @transform_1, window_bounds = array<i64: 1, 32, 16, 16>}]} {
    %c16_i32 = arith.constant 16 : i32
    %0 = arith.muli %arg1, %c16_i32 : i32
    %1 = tpu.assume_multiple %0, 16 : i32
    %2 = tpu.iota {dimensions = array<i32: 1>} : vector<16x16xi32>
    %3 = tpu.iota {dimensions = array<i32: 0>} : vector<16x16xi32>
    %4 = vector.broadcast %1 : i32 to vector<16x16xi32>
    %5 = arith.addi %3, %4 : vector<16x16xi32>
    %6 = arith.cmpi eq, %2, %5 : vector<16x16xi32>
    %7 = arith.extui %6 : vector<16x16xi1> to vector<16x16xi32>
    %8 = arith.sitofp %7 : vector<16x16xi32> to vector<16x16xf32>
    %c0 = arith.constant 0 : index
    %c0_0 = arith.constant 0 : index
    %c0_1 = arith.constant 0 : index
    %9 = vector.load %arg6[%c0, %c0_0, %c0_1] : memref<4x16x16xf32, #tpu.memory_space<vmem>>, vector<1x16x16xf32>
    %10 = vector.shape_cast %9 : vector<1x16x16xf32> to vector<16x16xf32>
    %11 = vector.shape_cast %8 : vector<16x16xf32> to vector<1x16x16xf32>
    tpu.vector_store %arg6[%c0, %c0_0, %c0_1], %11 {strides = array<i32>} : memref<4x16x16xf32, #tpu.memory_space<vmem>>, vector<1x16x16xf32>,
    %c0_2 = arith.constant 0 : index
    %12 = arith.index_cast %1 : i32 to index
    %c0_3 = arith.constant 0 : index
    %13 = vector.load %arg4[%c0_2, %12, %c0_3] : memref<1x16x16xf32, #tpu.memory_space<vmem>>, vector<1x16x16xf32>
    %14 = vector.shape_cast %13 : vector<1x16x16xf32> to vector<16x16xf32>
    %c1 = arith.constant 1 : index
    %c0_4 = arith.constant 0 : index
    %c0_5 = arith.constant 0 : index
    %15 = vector.load %arg6[%c1, %c0_4, %c0_5] : memref<4x16x16xf32, #tpu.memory_space<vmem>>, vector<1x16x16xf32>
    %16 = vector.shape_cast %15 : vector<1x16x16xf32> to vector<16x16xf32>
    %17 = vector.shape_cast %14 : vector<16x16xf32> to vector<1x16x16xf32>
    tpu.vector_store %arg6[%c1, %c0_4, %c0_5], %17 {strides = array<i32>} : memref<4x16x16xf32, #tpu.memory_space<vmem>>, vector<1x16x16xf32>,
    %c1_6 = arith.constant 1 : index
    %c0_7 = arith.constant 0 : index
    %c0_8 = arith.constant 0 : index
    %18 = vector.load %arg6[%c1_6, %c0_7, %c0_8] : memref<4x16x16xf32, #tpu.memory_space<vmem>>, vector<1x16x16xf32>
    %19 = vector.shape_cast %18 : vector<1x16x16xf32> to vector<16x16xf32>
    %c0_9 = arith.constant 0 : index
    %c0_10 = arith.constant 0 : index
    %c0_11 = arith.constant 0 : index
    %20 = vector.load %arg4[%c0_9, %c0_10, %c0_11] : memref<1x16x16xf32, #tpu.memory_space<vmem>>, vector<1x16x16xf32>
    %21 = vector.shape_cast %20 : vector<1x16x16xf32> to vector<16x16xf32>
    %cst = arith.constant dense<0.000000e+00> : vector<16x16xf32>
    %22 = tpu.matmul %19, %21, %cst {dimension_numbers = #tpu.dot_dimension_numbers<[1], [0], [0], [1], [0, 0, 1, 1], [], []>} : vector<16x16xf32>, vector<16x16xf32>, vector<16x16xf32> -> vector<16x16xf32>
    %c2 = arith.constant 2 : index
    %c0_12 = arith.constant 0 : index
    %c0_13 = arith.constant 0 : index
    %23 = vector.load %arg6[%c2, %c0_12, %c0_13] : memref<4x16x16xf32, #tpu.memory_space<vmem>>, vector<1x16x16xf32>
    %24 = vector.shape_cast %23 : vector<1x16x16xf32> to vector<16x16xf32>
    %25 = vector.shape_cast %22 : vector<16x16xf32> to vector<1x16x16xf32>
    tpu.vector_store %arg6[%c2, %c0_12, %c0_13], %25 {strides = array<i32>} : memref<4x16x16xf32, #tpu.memory_space<vmem>>, vector<1x16x16xf32>,
    %c2_14 = arith.constant 2 : index
    %c0_15 = arith.constant 0 : index
    %c0_16 = arith.constant 0 : index
    %26 = vector.load %arg6[%c2_14, %c0_15, %c0_16] : memref<4x16x16xf32, #tpu.memory_space<vmem>>, vector<1x16x16xf32>
    %27 = vector.shape_cast %26 : vector<1x16x16xf32> to vector<16x16xf32>
    %c0_17 = arith.constant 0 : index
    %c0_18 = arith.constant 0 : index
    %c0_19 = arith.constant 0 : index
    %28 = vector.load %arg4[%c0_17, %c0_18, %c0_19] : memref<1x16x16xf32, #tpu.memory_space<vmem>>, vector<1x16x16xf32>
    %29 = vector.shape_cast %28 : vector<1x16x16xf32> to vector<16x16xf32>
    %cst_20 = arith.constant dense<0.000000e+00> : vector<16x16xf32>
    %30 = tpu.matmul %27, %29, %cst_20 {dimension_numbers = #tpu.dot_dimension_numbers<[1], [0], [0], [1], [0, 0, 1, 1], [], []>} : vector<16x16xf32>, vector<16x16xf32>, vector<16x16xf32> -> vector<16x16xf32>
    %c3 = arith.constant 3 : index
    %c0_21 = arith.constant 0 : index
    %c0_22 = arith.constant 0 : index
    %31 = vector.load %arg6[%c3, %c0_21, %c0_22] : memref<4x16x16xf32, #tpu.memory_space<vmem>>, vector<1x16x16xf32>
    %32 = vector.shape_cast %31 : vector<1x16x16xf32> to vector<16x16xf32>
    %33 = vector.shape_cast %30 : vector<16x16xf32> to vector<1x16x16xf32>
    tpu.vector_store %arg6[%c3, %c0_21, %c0_22], %33 {strides = array<i32>} : memref<4x16x16xf32, #tpu.memory_space<vmem>>, vector<1x16x16xf32>,
    %c128_i32 = arith.constant 128 : i32
    %34 = arith.muli %arg0, %c128_i32 : i32
    %c32_i32 = arith.constant 32 : i32
    %35 = arith.muli %arg0, %c32_i32 : i32
    %c0_i32 = arith.constant 0 : i32
    %c32_i32_23 = arith.constant 32 : i32
    %36 = arith.addi %c0_i32, %c32_i32_23 : i32
    %c1_i32 = arith.constant 1 : i32
    scf.for %arg7 = %c0_i32 to %36 step %c1_i32  : i32 {
      %37 = arith.addi %35, %arg7 : i32
      %38 = arith.index_cast %37 : i32 to index
      %39 = memref.load %arg3[%38] : memref<64xf32, #tpu.memory_space<smem>>
      %40 = vector.broadcast %39 : f32 to vector<16x16xf32>
      %c0_i32_25 = arith.constant 0 : i32
      %41 = arith.addi %34, %c0_i32_25 : i32
      %42 = arith.addi %41, %arg7 : i32
      %43 = arith.index_cast %42 : i32 to index
      %44 = memref.load %arg2[%43] : memref<256xf32, #tpu.memory_space<smem>>
      %c0_26 = arith.constant 0 : index
      %c0_27 = arith.constant 0 : index
      %c0_28 = arith.constant 0 : index
      %45 = vector.load %arg6[%c0_26, %c0_27, %c0_28] : memref<4x16x16xf32, #tpu.memory_space<vmem>>, vector<1x16x16xf32>
      %46 = vector.shape_cast %45 : vector<1x16x16xf32> to vector<16x16xf32>
      %47 = vector.broadcast %44 : f32 to vector<16x16xf32>
      %48 = arith.mulf %47, %46 : vector<16x16xf32>
      %49 = arith.addf %40, %48 : vector<16x16xf32>
      %c32_i32_29 = arith.constant 32 : i32
      %50 = arith.addi %34, %c32_i32_29 : i32
      %51 = arith.addi %50, %arg7 : i32
      %52 = arith.index_cast %51 : i32 to index
      %53 = memref.load %arg2[%52] : memref<256xf32, #tpu.memory_space<smem>>
      %c1_30 = arith.constant 1 : index
      %c0_31 = arith.constant 0 : index
      %c0_32 = arith.constant 0 : index
      %54 = vector.load %arg6[%c1_30, %c0_31, %c0_32] : memref<4x16x16xf32, #tpu.memory_space<vmem>>, vector<1x16x16xf32>
      %55 = vector.shape_cast %54 : vector<1x16x16xf32> to vector<16x16xf32>
      %56 = vector.broadcast %53 : f32 to vector<16x16xf32>
      %57 = arith.mulf %56, %55 : vector<16x16xf32>
      %58 = arith.addf %49, %57 : vector<16x16xf32>
      %c64_i32 = arith.constant 64 : i32
      %59 = arith.addi %34, %c64_i32 : i32
      %60 = arith.addi %59, %arg7 : i32
      %61 = arith.index_cast %60 : i32 to index
      %62 = memref.load %arg2[%61] : memref<256xf32, #tpu.memory_space<smem>>
      %c2_33 = arith.constant 2 : index
      %c0_34 = arith.constant 0 : index
      %c0_35 = arith.constant 0 : index
      %63 = vector.load %arg6[%c2_33, %c0_34, %c0_35] : memref<4x16x16xf32, #tpu.memory_space<vmem>>, vector<1x16x16xf32>
      %64 = vector.shape_cast %63 : vector<1x16x16xf32> to vector<16x16xf32>
      %65 = vector.broadcast %62 : f32 to vector<16x16xf32>
      %66 = arith.mulf %65, %64 : vector<16x16xf32>
      %67 = arith.addf %58, %66 : vector<16x16xf32>
      %c96_i32 = arith.constant 96 : i32
      %68 = arith.addi %34, %c96_i32 : i32
      %69 = arith.addi %68, %arg7 : i32
      %70 = arith.index_cast %69 : i32 to index
      %71 = memref.load %arg2[%70] : memref<256xf32, #tpu.memory_space<smem>>
      %c3_36 = arith.constant 3 : index
      %c0_37 = arith.constant 0 : index
      %c0_38 = arith.constant 0 : index
      %72 = vector.load %arg6[%c3_36, %c0_37, %c0_38] : memref<4x16x16xf32, #tpu.memory_space<vmem>>, vector<1x16x16xf32>
      %73 = vector.shape_cast %72 : vector<1x16x16xf32> to vector<16x16xf32>
      %74 = vector.broadcast %71 : f32 to vector<16x16xf32>
      %75 = arith.mulf %74, %73 : vector<16x16xf32>
      %76 = arith.addf %67, %75 : vector<16x16xf32>
      %c0_39 = arith.constant 0 : index
      %77 = arith.index_cast %arg7 : i32 to index
      %c0_40 = arith.constant 0 : index
      %c0_41 = arith.constant 0 : index
      %78 = vector.load %arg5[%c0_39, %77, %c0_40, %c0_41] : memref<1x32x16x16xf32, #tpu.memory_space<vmem>>, vector<1x1x16x16xf32>
      %79 = vector.shape_cast %78 : vector<1x1x16x16xf32> to vector<16x16xf32>
      %80 = vector.shape_cast %76 : vector<16x16xf32> to vector<1x1x16x16xf32>
      tpu.vector_store %arg5[%c0_39, %77, %c0_40, %c0_41], %80 {strides = array<i32>} : memref<1x32x16x16xf32, #tpu.memory_space<vmem>>, vector<1x1x16x16xf32>,
    }
    %c32_i32_24 = arith.constant 32 : i32
    return
  }
  func.func @transform_0(%arg0: i32, %arg1: i32, %arg2: memref<256xf32, #tpu.memory_space<smem>>, %arg3: memref<64xf32, #tpu.memory_space<smem>>) -> (i32, i32, i32) {
    %c0_i32 = arith.constant 0 : i32
    %c0_i32_0 = arith.constant 0 : i32
    %c0_i32_1 = arith.constant 0 : i32
    return %arg0, %c0_i32, %c0_i32_0 : i32, i32, i32
  }
  func.func @transform_1(%arg0: i32, %arg1: i32, %arg2: memref<256xf32, #tpu.memory_space<smem>>, %arg3: memref<64xf32, #tpu.memory_space<smem>>) -> (i32, i32, i32, i32) {
    %c0_i32 = arith.constant 0 : i32
    %c0_i32_0 = arith.constant 0 : i32
    %c0_i32_1 = arith.constant 0 : i32
    return %arg0, %c0_i32, %arg1, %c0_i32_0 : i32, i32, i32, i32
  }
}

</mosaic_0001>

<llo_original>
// kernel: metapath_rrwp_forward.4
$region0: #{metapath_rrwp_forward.4}
  #allocation0 [shape = 'u32[]', space=smem, size = 0x4, offset = 0x4, fixed_abs, tag = 'smem constant byte address 0x4 - core index']
  #allocation1 [shape = 'u32[144,128]{1,0:T(1,128)}', space=vmem, size = 0x12000, scoped, tag = 'internal scratch']
  %s0 = inlined_call_operand.hbm [shape: f32[16,16], index: 0, kind: input, shape index: {}]
  %s1 = inlined_call_operand.hbm [shape: f32[16,16], index: 1, kind: input, shape index: {}]
  %s2 = inlined_call_operand.vmem [shape: f32[16,16], index: 2, kind: output, shape index: {}]
  %s3 = sld [smem:[#allocation0]]
  $region30: #{metapath_rrwp_forward.4} parent=0
    _
  %s5 = ssub.s32 1, %s3
  %s6 = scalar_select 0, %s5, %s3
  $region1: #{metapath_rrwp_forward.4} parent=0
    #allocation2 [shape = 'u8[8192]{0}', space=vmem, size = 0x2000, scoped, tag = 'input window, operand 0, single buffered']
    #allocation3 [shape = 's32[1]{0}', space=sflag, size = 0x4, scoped, tag = 'scoped memory for metapath_rrwp_forward.4']
    #allocation4 [shape = 'u8[8192]{0}', space=vmem, size = 0x2000, scoped, tag = 'input window, operand 1, single buffered']
    #allocation5 [shape = 's32[1]{0}', space=sflag, size = 0x4, scoped, tag = 'scoped memory for metapath_rrwp_forward.4']
    %7 = vsyncpa [#allocation3], 0
    %8 = vsyncpa [#allocation5], 0
    // Predicated region
    $region2: #{metapath_rrwp_forward.4} parent=1 // pred_check
      _
    $region3: #{metapath_rrwp_forward.4} parent=1 // pred_check_branch
      %10 = sbr.rel (0) target = $region5
    $region4: #{metapath_rrwp_forward.4} parent=1 // pred_region
      %s12 = ssub.s32 256, 256
      %13 = vsyncadd [#allocation3], %s12
      %s14 = sshll.u32 [#allocation2], 4
      %s15 = int_to_ptr.vmem [resolvable:$true] %s14
      %20 = dma.hbm_to_vmem [thread:$0]  %s0, 256, %s15, [#allocation3], 128, 128, 8
    $region5: #{metapath_rrwp_forward.4} parent=1 // pred_fallthru
      _
    // Predicated region
    $region6: #{metapath_rrwp_forward.4} parent=1 // pred_check
      _
    $region7: #{metapath_rrwp_forward.4} parent=1 // pred_check_branch
      %22 = sbr.rel (0) target = $region9
    $region8: #{metapath_rrwp_forward.4} parent=1 // pred_region
      %s24 = ssub.s32 256, 256
      %25 = vsyncadd [#allocation5], %s24
      %s26 = sshll.u32 [#allocation4], 4
      %s27 = int_to_ptr.vmem [resolvable:$true] %s26
      %32 = dma.hbm_to_vmem [thread:$0]  %s1, 256, %s27, [#allocation5], 128, 128, 8
    $region9: #{metapath_rrwp_forward.4} parent=1 // pred_fallthru
      _
    // Predicated region
    $region10: #{metapath_rrwp_forward.4} parent=1 // pred_check
      _
    $region11: #{metapath_rrwp_forward.4} parent=1 // pred_check_branch
      %34 = sbr.rel (0) target = $region13
    $region12: #{metapath_rrwp_forward.4} parent=1 // pred_region
      %35 = dma.done [#allocation3], 256
    $region13: #{metapath_rrwp_forward.4} parent=1 // pred_fallthru
      _
    // Predicated region
    $region14: #{metapath_rrwp_forward.4} parent=1 // pred_check
      _
    $region15: #{metapath_rrwp_forward.4} parent=1 // pred_check_branch
      %37 = sbr.rel (0) target = $region17
    $region16: #{metapath_rrwp_forward.4} parent=1 // pred_region
      %38 = dma.done [#allocation5], 256
    $region17: #{metapath_rrwp_forward.4} parent=1 // pred_fallthru
      _
    %p39 = scmp.eq.s32.totalorder 0, 0
    // Predicated region
    $region18: #{metapath_rrwp_forward.4} parent=1 // pred_check
      %p40 = pneg %p39
    $region19: #{metapath_rrwp_forward.4} parent=1 // pred_check_branch
      %42 = sbr.rel (%p40) target = $region21
    $region20: #{metapath_rrwp_forward.4} parent=1 // pred_region
      %vm43 = vcmask 130048
      %44 = vst.msk [vmem:[%s2] sm:$0xff] %vm43, 0.0
      %45 = vst.msk [vmem:[%s2 + $0x8] sm:$0xff] %vm43, 0.0
    $region21: #{metapath_rrwp_forward.4} parent=1 // pred_fallthru
      _
    %v46 = vld [vmem:[%s2] sm:$0xff]
    %v47 = vld [vmem:[%s2 + $0x8] sm:$0xff]
    %v48 = vld [vmem:[#allocation2] sm:$0xff]
    %v49 = vld [vmem:[#allocation2 + $0x8] sm:$0xff]
    %v50 = vld [vmem:[#allocation4] sm:$0xff]
    %v51 = vld [vmem:[#allocation4 + $0x8] sm:$0xff]
    %vm52 = vcmask 130048
    %v54 = vsel %vm52, %v48, 0
    %v57 = vsel %vm52, %v49, 0
    %59 = vmatprep.subr.mxu0 0.0
    %60 = vmatpush1.msra.mxu0 %v50
    %61 = vmatprep.subr.mxu0 0.0
    %62 = vmatpush1.msra.mxu0 %v51
    %63 = vmatprep.subr.mxu0 0.0
    %64 = vmatpush1.msra.mxu0 0.0
    %65 = vmatprep.subr.mxu0 0.0
    %66 = vmatpush1.msra.mxu0 0.0
    %67 = vmatprep.subr.mxu0 0.0
    %68 = vmatpush1.msra.mxu0 0.0
    %69 = vmatprep.subr.mxu0 0.0
    %70 = vmatpush1.msra.mxu0 0.0
    %71 = vmatprep.subr.mxu0 0.0
    %72 = vmatpush1.msra.mxu0 0.0
    %73 = vmatprep.subr.mxu0 0.0
    %74 = vmatpush1.msra.mxu0 0.0
    %75 = vmatprep.subr.mxu0 0.0
    %76 = vmatpush1.msra.mxu0 0.0
    %77 = vmatprep.subr.mxu0 0.0
    %78 = vmatpush1.msra.mxu0 0.0
    %79 = vmatprep.subr.mxu0 0.0
    %80 = vmatpush1.msra.mxu0 0.0
    %81 = vmatprep.subr.mxu0 0.0
    %82 = vmatpush1.msra.mxu0 0.0
    %83 = vmatprep.subr.mxu0 0.0
    %84 = vmatpush1.msra.mxu0 0.0
    %85 = vmatprep.subr.mxu0 0.0
    %86 = vmatpush1.msra.mxu0 0.0
    %87 = vmatprep.subr.mxu0 0.0
    %88 = vmatpush1.msra.mxu0 0.0
    %89 = vmatprep.subr.mxu0 0.0
    %90 = vmatpush1.msra.mxu0 0.0
    %91 = vmatprep.subr.mxu0 0.0
    %92 = vmatpush1.msra.mxu0 0.0
    %93 = vmatprep.subr.mxu0 0.0
    %94 = vmatpush1.msra.mxu0 0.0
    %95 = vmatprep.subr.mxu0 0.0
    %96 = vmatpush1.msra.mxu0 0.0
    %97 = vmatprep.subr.mxu0 0.0
    %98 = vmatpush1.msra.mxu0 0.0
    %99 = vmatprep.subr.mxu0 0.0
    %100 = vmatpush1.msra.mxu0 0.0
    %101 = vmatprep.subr.mxu0 0.0
    %102 = vmatpush1.msra.mxu0 0.0
    %103 = vmatprep.subr.mxu0 0.0
    %104 = vmatpush1.msra.mxu0 0.0
    %105 = vmatprep.subr.mxu0 0.0
    %106 = vmatpush1.msra.mxu0 0.0
    %107 = vmatprep.subr.mxu0 0.0
    %108 = vmatpush1.msra.mxu0 0.0
    %109 = vmatprep.subr.mxu0 0.0
    %110 = vmatpush1.msra.mxu0 0.0
    %111 = vmatprep.subr.mxu0 0.0
    %112 = vmatpush1.msra.mxu0 0.0
    %113 = vmatprep.subr.mxu0 0.0
    %114 = vmatpush1.msra.mxu0 0.0
    %115 = vmatprep.subr.mxu0 0.0
    %116 = vmatpush1.msra.mxu0 0.0
    %117 = vmatprep.subr.mxu0 0.0
    %118 = vmatpush1.msra.mxu0 0.0
    %119 = vmatprep.subr.mxu0 0.0
    %120 = vmatpush1.msra.mxu0 0.0
    %121 = vmatprep.subr.mxu0 0.0
    %122 = vmatpush1.msra.mxu0 0.0
    %123 = vmatprep.mubr.f32.mxu0 0.0
    %124 = vmatmul.mubr.f32.gmra.mrb[0].mxu0 %v54
    %v125 = vpop.f32.mrb[0].mxu0
    %v126 = vadd.f32 0.0, %v125
    %v127 = vpop.f32.mrb[0].mxu0
    %128 = vmatprep.mubr.f32.mxu0 0.0
    %129 = vmatmul.mubr.f32.gmra.mrb[0].mxu0 %v57
    %v130 = vpop.f32.mrb[0].mxu0
    %v131 = vadd.f32 0.0, %v130
    %v132 = vpop.f32.mrb[0].mxu0
    %133 = vdwg.mxu0
    %v134 = vadd.f32 %v46, %v126
    %v135 = vadd.f32 %v47, %v131
    %136 = vst.msk [vmem:[%s2] sm:$0xff] %vm52, %v134
    %137 = vst.msk [vmem:[%s2 + $0x8] sm:$0xff] %vm52, %v135
    // Predicated region
    $region22: #{metapath_rrwp_forward.4} parent=1 // pred_check
      _
    $region23: #{metapath_rrwp_forward.4} parent=1 // pred_check_branch
      %139 = sbr.rel (0) target = $region25
    $region24: #{metapath_rrwp_forward.4} parent=1 // pred_region
      _
    $region25: #{metapath_rrwp_forward.4} parent=1 // pred_fallthru
      _
    // Predicated region
    $region26: #{metapath_rrwp_forward.4} parent=1 // pred_check
      _
    $region27: #{metapath_rrwp_forward.4} parent=1 // pred_check_branch
      %141 = sbr.rel (0) target = $region29
    $region28: #{metapath_rrwp_forward.4} parent=1 // pred_region
      _
    $region29: #{metapath_rrwp_forward.4} parent=1 // pred_fallthru
      _
    %142 = vsyncpa [#allocation3], 1
    %143 = vsyncpa [#allocation5], 1

// kernel: metapath_rrwp_forward.3
$region0: #{metapath_rrwp_forward.3}
  #allocation0 [shape = 'u32[]', space=smem, size = 0x4, offset = 0x4, fixed_abs, tag = 'smem constant byte address 0x4 - core index']
  #allocation1 [shape = 'u32[144,128]{1,0:T(1,128)}', space=vmem, size = 0x12000, scoped, tag = 'internal scratch']
  %s0 = inlined_call_operand.hbm [shape: f32[16,16], index: 0, kind: input, shape index: {}]
  %s1 = inlined_call_operand.vmem [shape: f32[16,16], index: 1, kind: input, shape index: {}]
  %s2 = inlined_call_operand.vmem [shape: f32[16,16], index: 2, kind: output, shape index: {}]
  %s3 = sld [smem:[#allocation0]]
  $region26: #{metapath_rrwp_forward.3} parent=0
    _
  %s5 = ssub.s32 1, %s3
  %s6 = scalar_select 0, %s5, %s3
  $region1: #{metapath_rrwp_forward.3} parent=0
    #allocation2 [shape = 'u8[8192]{0}', space=vmem, size = 0x2000, scoped, tag = 'input window, operand 0, single buffered']
    #allocation3 [shape = 's32[1]{0}', space=sflag, size = 0x4, scoped, tag = 'scoped memory for metapath_rrwp_forward.3']
    %7 = vsyncpa [#allocation3], 0
    // Predicated region
    $region2: #{metapath_rrwp_forward.3} parent=1 // pred_check
      _
    $region3: #{metapath_rrwp_forward.3} parent=1 // pred_check_branch
      %9 = sbr.rel (0) target = $region5
    $region4: #{metapath_rrwp_forward.3} parent=1 // pred_region
      %s11 = ssub.s32 256, 256
      %12 = vsyncadd [#allocation3], %s11
      %s13 = sshll.u32 [#allocation2], 4
      %s14 = int_to_ptr.vmem [resolvable:$true] %s13
      %19 = dma.hbm_to_vmem [thread:$0]  %s0, 256, %s14, [#allocation3], 128, 128, 8
    $region5: #{metapath_rrwp_forward.3} parent=1 // pred_fallthru
      _
    // Predicated region
    $region6: #{metapath_rrwp_forward.3} parent=1 // pred_check
      _
    $region7: #{metapath_rrwp_forward.3} parent=1 // pred_check_branch
      %21 = sbr.rel (0) target = $region9
    $region8: #{metapath_rrwp_forward.3} parent=1 // pred_region
      _
    $region9: #{metapath_rrwp_forward.3} parent=1 // pred_fallthru
      _
    // Predicated region
    $region10: #{metapath_rrwp_forward.3} parent=1 // pred_check
      _
    $region11: #{metapath_rrwp_forward.3} parent=1 // pred_check_branch
      %23 = sbr.rel (0) target = $region13
    $region12: #{metapath_rrwp_forward.3} parent=1 // pred_region
      %24 = dma.done [#allocation3], 256
    $region13: #{metapath_rrwp_forward.3} parent=1 // pred_fallthru
      _
    %p25 = scmp.eq.s32.totalorder 0, 0
    // Predicated region
    $region14: #{metapath_rrwp_forward.3} parent=1 // pred_check
      %p26 = pneg %p25
    $region15: #{metapath_rrwp_forward.3} parent=1 // pred_check_branch
      %28 = sbr.rel (%p26) target = $region17
    $region16: #{metapath_rrwp_forward.3} parent=1 // pred_region
      %vm29 = vcmask 130048
      %30 = vst.msk [vmem:[%s2] sm:$0xff] %vm29, 0.0
      %31 = vst.msk [vmem:[%s2 + $0x8] sm:$0xff] %vm29, 0.0
    $region17: #{metapath_rrwp_forward.3} parent=1 // pred_fallthru
      _
    %v32 = vld [vmem:[%s2] sm:$0xff]
    %v33 = vld [vmem:[%s2 + $0x8] sm:$0xff]
    %v34 = vld [vmem:[#allocation2] sm:$0xff]
    %v35 = vld [vmem:[#allocation2 + $0x8] sm:$0xff]
    %v36 = vld [vmem:[%s1] sm:$0xff]
    %v37 = vld [vmem:[%s1 + $0x8] sm:$0xff]
    %vm38 = vcmask 130048
    %v40 = vsel %vm38, %v34, 0
    %v43 = vsel %vm38, %v35, 0
    %45 = vmatprep.subr.mxu0 0.0
    %46 = vmatpush1.msra.mxu0 %v36
    %47 = vmatprep.subr.mxu0 0.0
    %48 = vmatpush1.msra.mxu0 %v37
    %49 = vmatprep.subr.mxu0 0.0
    %50 = vmatpush1.msra.mxu0 0.0
    %51 = vmatprep.subr.mxu0 0.0
    %52 = vmatpush1.msra.mxu0 0.0
    %53 = vmatprep.subr.mxu0 0.0
    %54 = vmatpush1.msra.mxu0 0.0
    %55 = vmatprep.subr.mxu0 0.0
    %56 = vmatpush1.msra.mxu0 0.0
    %57 = vmatprep.subr.mxu0 0.0
    %58 = vmatpush1.msra.mxu0 0.0
    %59 = vmatprep.subr.mxu0 0.0
    %60 = vmatpush1.msra.mxu0 0.0
    %61 = vmatprep.subr.mxu0 0.0
    %62 = vmatpush1.msra.mxu0 0.0
    %63 = vmatprep.subr.mxu0 0.0
    %64 = vmatpush1.msra.mxu0 0.0
    %65 = vmatprep.subr.mxu0 0.0
    %66 = vmatpush1.msra.mxu0 0.0
    %67 = vmatprep.subr.mxu0 0.0
    %68 = vmatpush1.msra.mxu0 0.0
    %69 = vmatprep.subr.mxu0 0.0
    %70 = vmatpush1.msra.mxu0 0.0
    %71 = vmatprep.subr.mxu0 0.0
    %72 = vmatpush1.msra.mxu0 0.0
    %73 = vmatprep.subr.mxu0 0.0
    %74 = vmatpush1.msra.mxu0 0.0
    %75 = vmatprep.subr.mxu0 0.0
    %76 = vmatpush1.msra.mxu0 0.0
    %77 = vmatprep.subr.mxu0 0.0
    %78 = vmatpush1.msra.mxu0 0.0
    %79 = vmatprep.subr.mxu0 0.0
    %80 = vmatpush1.msra.mxu0 0.0
    %81 = vmatprep.subr.mxu0 0.0
    %82 = vmatpush1.msra.mxu0 0.0
    %83 = vmatprep.subr.mxu0 0.0
    %84 = vmatpush1.msra.mxu0 0.0
    %85 = vmatprep.subr.mxu0 0.0
    %86 = vmatpush1.msra.mxu0 0.0
    %87 = vmatprep.subr.mxu0 0.0
    %88 = vmatpush1.msra.mxu0 0.0
    %89 = vmatprep.subr.mxu0 0.0
    %90 = vmatpush1.msra.mxu0 0.0
    %91 = vmatprep.subr.mxu0 0.0
    %92 = vmatpush1.msra.mxu0 0.0
    %93 = vmatprep.subr.mxu0 0.0
    %94 = vmatpush1.msra.mxu0 0.0
    %95 = vmatprep.subr.mxu0 0.0
    %96 = vmatpush1.msra.mxu0 0.0
    %97 = vmatprep.subr.mxu0 0.0
    %98 = vmatpush1.msra.mxu0 0.0
    %99 = vmatprep.subr.mxu0 0.0
    %100 = vmatpush1.msra.mxu0 0.0
    %101 = vmatprep.subr.mxu0 0.0
    %102 = vmatpush1.msra.mxu0 0.0
    %103 = vmatprep.subr.mxu0 0.0
    %104 = vmatpush1.msra.mxu0 0.0
    %105 = vmatprep.subr.mxu0 0.0
    %106 = vmatpush1.msra.mxu0 0.0
    %107 = vmatprep.subr.mxu0 0.0
    %108 = vmatpush1.msra.mxu0 0.0
    %109 = vmatprep.mubr.f32.mxu0 0.0
    %110 = vmatmul.mubr.f32.gmra.mrb[0].mxu0 %v40
    %v111 = vpop.f32.mrb[0].mxu0
    %v112 = vadd.f32 0.0, %v111
    %v113 = vpop.f32.mrb[0].mxu0
    %114 = vmatprep.mubr.f32.mxu0 0.0
    %115 = vmatmul.mubr.f32.gmra.mrb[0].mxu0 %v43
    %v116 = vpop.f32.mrb[0].mxu0
    %v117 = vadd.f32 0.0, %v116
    %v118 = vpop.f32.mrb[0].mxu0
    %119 = vdwg.mxu0
    %v120 = vadd.f32 %v32, %v112
    %v121 = vadd.f32 %v33, %v117
    %122 = vst.msk [vmem:[%s2] sm:$0xff] %vm38, %v120
    %123 = vst.msk [vmem:[%s2 + $0x8] sm:$0xff] %vm38, %v121
    // Predicated region
    $region18: #{metapath_rrwp_forward.3} parent=1 // pred_check
      _
    $region19: #{metapath_rrwp_forward.3} parent=1 // pred_check_branch
      %125 = sbr.rel (0) target = $region21
    $region20: #{metapath_rrwp_forward.3} parent=1 // pred_region
      _
    $region21: #{metapath_rrwp_forward.3} parent=1 // pred_fallthru
      _
    // Predicated region
    $region22: #{metapath_rrwp_forward.3} parent=1 // pred_check
      _
    $region23: #{metapath_rrwp_forward.3} parent=1 // pred_check_branch
      %127 = sbr.rel (0) target = $region25
    $region24: #{metapath_rrwp_forward.3} parent=1 // pred_region
      _
    $region25: #{metapath_rrwp_forward.3} parent=1 // pred_fallthru
      _
    %128 = vsyncpa [#allocation3], 1

// kernel: metapath_rrwp_forward.5
$region0: #{metapath_rrwp_forward.5}
  #allocation0 [shape = 'u32[]', space=smem, size = 0x4, offset = 0x4, fixed_abs, tag = 'smem constant byte address 0x4 - core index']
  #allocation1 [shape = 'u32[144,128]{1,0:T(1,128)}', space=vmem, size = 0x12000, scoped, tag = 'internal scratch']
  #allocation2 [shape = 'f32[4,16,16]{2,1,0:T(8,128)}', space=vmem, size = 0x8000, scoped, tag = 'scratch operand']
  #allocation3 [shape = 's32[1]{0}', space=sflag, size = 0x4, scoped, tag = 'scoped memory for metapath_rrwp_forward.5']
  #allocation4 [shape = 'u8[1024]{0}', space=smem, size = 0x400, scoped, tag = 'prefetched SMEM operand 0']
  #allocation5 [shape = 'u8[512]{0}', space=smem, size = 0x200, scoped, tag = 'prefetched SMEM operand 1']
  %s0 = inlined_call_operand.vmem [shape: f32[256], index: 0, kind: input, shape index: {}]
  %s1 = inlined_call_operand.vmem [shape: f32[64], index: 1, kind: input, shape index: {}]
  %s2 = inlined_call_operand.vmem [shape: f32[2,16,16], index: 2, kind: input, shape index: {}]
  %s3 = inlined_call_operand.vmem [shape: f32[2,32,16,16], index: 3, kind: output, shape index: {}]
  %s4 = sld [smem:[#allocation0]]
  $region44: #{metapath_rrwp_forward.5} parent=0
    _
  %s6 = ssub.s32 1, %s4
  %s7 = scalar_select 0, %s6, %s4
  %s8 = sshll.u32 %s0, 4
  %s9 = int_to_ptr.vmem [resolvable:$true] %s8
  %11 = dma.vmem_to_smem %s9, 32, [#allocation4], [#allocation3]
  %s12 = sshll.u32 %s1, 4
  %s13 = int_to_ptr.vmem [resolvable:$true] %s12
  %15 = dma.vmem_to_smem %s13, 16, [#allocation5], [#allocation3]
  %16 = dma.done [#allocation3], 48
  %17 = sfence
  loop: start=0, step=1, limit=4
  $region2: #{metapath_rrwp_forward.5} parent=0 // loop_pre_header
    _
  $region3: #{metapath_rrwp_forward.5} parent=0 // loop_header
    %s19 = sphi 0, %s23
    %p20 = scmp.ge.s32.totalorder %s19, 4
    %s26 = sphi 0, %s38
    %s27 = sphi 0, %s34
    %s28 = sphi 0, %s26
    %s29 = sphi 0, %s27
    %s30 = sphi 0, %s28
    %s31 = sphi 0, %s29
    %s41 = sphi 0, %s43
    %s44 = sphi 0, %s41
    %s45 = sphi 0, %s44
    %s61 = sphi 0, %s45
    %s69 = sphi 0, %s71
    %s72 = sphi 0, %s69
    %s73 = sphi 0, %s72
    %s89 = sphi 0, %s73
  $region4: #{metapath_rrwp_forward.5} parent=0 // loop_header_branch
    %22 = sbr.rel (%p20) target = $region8
  $region5: #{metapath_rrwp_forward.5} parent=0 // loop_body
    %s24 = ssub.s32 %s19, 1
    %s25 = ssub.s32 %s19, 2
    %s32 = sadd.s32 1, %s27
    %p33 = scmp.ge.s32.totalorder %s32, 1
    %s34 = scalar_select %p33, 0, %s32
    %s35 = sadd.s32 1, %s26
    %s36 = scalar_select %p33, %s35, %s26
    %p37 = scmp.ge.s32.totalorder %s36, 2
    %s38 = scalar_select %p37, 0, %s36
    %s39 = ssub.s32 %s26, %s38
    %p40 = scmp.eq.s32.totalorder %s39, 0
    %s42 = sadd.s32 %s41, 1
    %s43 = scalar_select %p40, %s41, %s42
    %p46 = pneg %p40
    %p47 = scmp.eq.s32.totalorder %s19, 1
    %p48 = por %p46, %p47
    %p49 = scmp.ne.s32.totalorder %s41, %s44
    %p50 = scmp.eq.s32.totalorder %s19, 0
    %p51 = por %p49, %p50
    %p52 = scmp.ne.s32.totalorder %s41, %s44
    %p53 = scmp.eq.s32.totalorder %s24, 1
    %p54 = por %p52, %p53
    %p55 = scmp.ne.s32.totalorder %s44, %s45
    %p56 = scmp.eq.s32.totalorder %s24, 0
    %p57 = por %p55, %p56
    %p58 = scmp.ne.s32.totalorder %s44, %s45
    %p59 = scmp.eq.s32.totalorder %s25, 1
    %p60 = por %p58, %p59
    %p62 = scmp.ne.s32.totalorder %s45, %s61
    %p63 = scmp.eq.s32.totalorder %s25, 0
    %p64 = por %p62, %p63
    %s65 = ssub.s32 %s26, %s38
    %s66 = ssub.s32 %s27, %s34
    %s67 = sor.u32 %s65, %s66
    %p68 = scmp.eq.s32.totalorder %s67, 0
    %s70 = sadd.s32 %s69, 1
    %s71 = scalar_select %p68, %s69, %s70
    %p74 = pneg %p68
    %p75 = scmp.eq.s32.totalorder %s19, 1
    %p76 = por %p74, %p75
    %p77 = scmp.ne.s32.totalorder %s69, %s72
    %p78 = scmp.eq.s32.totalorder %s19, 0
    %p79 = por %p77, %p78
    %p80 = scmp.ne.s32.totalorder %s69, %s72
    %p81 = scmp.eq.s32.totalorder %s24, 1
    %p82 = por %p80, %p81
    %p83 = scmp.ne.s32.totalorder %s72, %s73
    %p84 = scmp.eq.s32.totalorder %s24, 0
    %p85 = por %p83, %p84
    %p86 = scmp.ne.s32.totalorder %s72, %s73
    %p87 = scmp.eq.s32.totalorder %s25, 1
    %p88 = por %p86, %p87
    %p90 = scmp.ne.s32.totalorder %s73, %s89
    %p91 = scmp.eq.s32.totalorder %s25, 0
    %p92 = por %p90, %p91
    %p93 = scmp.le.s32.totalorder 1, %s19
    %p94 = scmp.lt.s32.totalorder %s19, 3
    %p95 = pnand %p93, %p94
    %p96 = pneg %p95
    // Predicated region
    $region9: #{metapath_rrwp_forward.5} parent=5 // pred_check
      _
    $region10: #{metapath_rrwp_forward.5} parent=5 // pred_check_branch
      %98 = sbr.rel (%p95) target = $region12
    $region11: #{metapath_rrwp_forward.5} parent=5 // pred_region
      %s99 = ssub.s32 %s19, 1
    $region12: #{metapath_rrwp_forward.5} parent=5 // pred_fallthru
      _
    %p100 = scmp.lt.s32.totalorder %s19, 2
    // Predicated region
    $region13: #{metapath_rrwp_forward.5} parent=5 // pred_check
      %p101 = pneg %p100
    $region14: #{metapath_rrwp_forward.5} parent=5 // pred_check_branch
      %103 = sbr.rel (%p101) target = $region16
    $region15: #{metapath_rrwp_forward.5} parent=5 // pred_region
      // Predicated region
      $region17: #{metapath_rrwp_forward.5} parent=15 // pred_check
        %p104 = pneg %p51
      $region18: #{metapath_rrwp_forward.5} parent=15 // pred_check_branch
        %106 = sbr.rel (%p104) target = $region20
      $region19: #{metapath_rrwp_forward.5} parent=15 // pred_region
        %p107 = scmp.lt.s32.totalorder %s26, 1
        %s108 = scalar_select %p107, %s26, 1
        %s109 = smul.addr %s108, 2
        %s110 = smul.addr %s109, 8
        %s111 = scalar_lea.vmem %s2, %s110
      $region20: #{metapath_rrwp_forward.5} parent=15 // pred_fallthru
        _
    $region16: #{metapath_rrwp_forward.5} parent=5 // pred_fallthru
      _
    %p112 = scmp.le.s32.totalorder 1, %s19
    %p113 = scmp.lt.s32.totalorder %s19, 3
    %p114 = pnand %p112, %p113
    %p115 = pneg %p114
    // Predicated region
    $region21: #{metapath_rrwp_forward.5} parent=5 // pred_check
      _
    $region22: #{metapath_rrwp_forward.5} parent=5 // pred_check_branch
      %117 = sbr.rel (%p114) target = $region24
    $region23: #{metapath_rrwp_forward.5} parent=5 // pred_region
      %s118 = ssub.s32 %s19, 1
      %p119 = scmp.lt.s32.totalorder %s28, 1
      %s120 = scalar_select %p119, %s28, 1
      %s121 = smul.addr %s120, 2
      %s122 = smul.addr %s121, 8
      %s123 = scalar_lea.vmem %s2, %s122
      %p124 = pneg %p57
      %p125 = pneg %p54
      %p126 = pneg %p85
      %p127 = pneg %p82
      %s128 = smul.u32 2, %s29
      %p129 = scmp.lt.s32.totalorder %s28, 1
      %s130 = scalar_select %p129, %s28, 1
      %p131 = scmp.lt.s32.totalorder %s128, 1
      %s132 = scalar_select %p131, %s128, 1
      %s133 = smul.addr %s130, 64
      %s134 = sadd.s32 %s132, %s133
      %s135 = smul.addr %s134, 8
      %s136 = scalar_lea.vmem %s3, %s135
      %p137 = scmp.lt.s32.totalorder %s28, 1
      %s138 = scalar_select %p137, %s28, 1
      %s139 = smul.addr %s138, 2
      %s140 = smul.addr %s139, 8
      %s141 = scalar_lea.vmem %s2, %s140
      %s142 = smul.u32 2, %s29
      %p143 = scmp.lt.s32.totalorder %s28, 1
      %s144 = scalar_select %p143, %s28, 1
      %p145 = scmp.lt.s32.totalorder %s142, 1
      %s146 = scalar_select %p145, %s142, 1
      %s147 = smul.addr %s144, 64
      %s148 = sadd.s32 %s146, %s147
      %s149 = smul.addr %s148, 8
      %s150 = scalar_lea.vmem %s3, %s149
      %s151 = smul.u32 2, %s29
      %s152 = smul.u32 %s29, 16
      %v153 = vlaneseq
      %v154 = vand.u32 %v153, 127
      %v155 = vlaneseq
      %v156 = vshrl.u32 %v155, 7
      %v157 = vadd.s32 %v156, 8
      %v158 = vstv %s152
      %v159 = vadd.s32 %v156, %v158
      %v160 = vadd.s32 %v157, %v158
      %vm161 = vcmp.eq.s32.totalorder %v154, %v159
      %vm162 = vcmp.eq.s32.totalorder %v154, %v160
      %v163 = vsel %vm161, 1, 0
      %v164 = vsel %vm162, 1, 0
      %v165 = vcvt.s32.f32 %v163
      %v166 = vcvt.s32.f32 %v164
      %vm167 = vcmask 130048
      %168 = vst.msk [vmem:[#allocation2] sm:$0xff] %vm167, %v165
      %169 = vst.msk [vmem:[#allocation2 + $0x8] sm:$0xff] %vm167, %v166
      %s170 = scalar_lea.vmem %s141, %s152
      %v171 = vld [vmem:[%s170] sm:$0xff]
      %v172 = vld [vmem:[%s170 + $0x8] sm:$0xff]
      %s173 = scalar_lea.vmem [#allocation2], 16
      %174 = vst.msk [vmem:[%s173] sm:$0xff] %vm167, %v171
      %175 = vst.msk [vmem:[%s173 + $0x8] sm:$0xff] %vm167, %v172
      %v176 = vld [vmem:[%s173] sm:$0xff]
      %v177 = vld [vmem:[%s173 + $0x8] sm:$0xff]
      %v178 = vld [vmem:[%s141] sm:$0xff]
      %v179 = vld [vmem:[%s141 + $0x8] sm:$0xff]
      %v181 = vsel %vm167, %v176, 0
      %v184 = vsel %vm167, %v177, 0
      %186 = vmatprep.subr.mxu0 0.0
      %187 = vmatpush1.msra.mxu0 %v178
      %188 = vmatprep.subr.mxu0 0.0
      %189 = vmatpush1.msra.mxu0 %v179
      %190 = vmatprep.subr.mxu0 0.0
      %191 = vmatpush1.msra.mxu0 0.0
      %192 = vmatprep.subr.mxu0 0.0
      %193 = vmatpush1.msra.mxu0 0.0
      %194 = vmatprep.subr.mxu0 0.0
      %195 = vmatpush1.msra.mxu0 0.0
      %196 = vmatprep.subr.mxu0 0.0
      %197 = vmatpush1.msra.mxu0 0.0
      %198 = vmatprep.subr.mxu0 0.0
      %199 = vmatpush1.msra.mxu0 0.0
      %200 = vmatprep.subr.mxu0 0.0
      %201 = vmatpush1.msra.mxu0 0.0
      %202 = vmatprep.subr.mxu0 0.0
      %203 = vmatpush1.msra.mxu0 0.0
      %204 = vmatprep.subr.mxu0 0.0
      %205 = vmatpush1.msra.mxu0 0.0
      %206 = vmatprep.subr.mxu0 0.0
      %207 = vmatpush1.msra.mxu0 0.0
      %208 = vmatprep.subr.mxu0 0.0
      %209 = vmatpush1.msra.mxu0 0.0
      %210 = vmatprep.subr.mxu0 0.0
      %211 = vmatpush1.msra.mxu0 0.0
      %212 = vmatprep.subr.mxu0 0.0
      %213 = vmatpush1.msra.mxu0 0.0
      %214 = vmatprep.subr.mxu0 0.0
      %215 = vmatpush1.msra.mxu0 0.0
      %216 = vmatprep.subr.mxu0 0.0
      %217 = vmatpush1.msra.mxu0 0.0
      %218 = vmatprep.subr.mxu0 0.0
      %219 = vmatpush1.msra.mxu0 0.0
      %220 = vmatprep.subr.mxu0 0.0
      %221 = vmatpush1.msra.mxu0 0.0
      %222 = vmatprep.subr.mxu0 0.0
      %223 = vmatpush1.msra.mxu0 0.0
      %224 = vmatprep.subr.mxu0 0.0
      %225 = vmatpush1.msra.mxu0 0.0
      %226 = vmatprep.subr.mxu0 0.0
      %227 = vmatpush1.msra.mxu0 0.0
      %228 = vmatprep.subr.mxu0 0.0
      %229 = vmatpush1.msra.mxu0 0.0
      %230 = vmatprep.subr.mxu0 0.0
      %231 = vmatpush1.msra.mxu0 0.0
      %232 = vmatprep.subr.mxu0 0.0
      %233 = vmatpush1.msra.mxu0 0.0
      %234 = vmatprep.subr.mxu0 0.0
      %235 = vmatpush1.msra.mxu0 0.0
      %236 = vmatprep.subr.mxu0 0.0
      %237 = vmatpush1.msra.mxu0 0.0
      %238 = vmatprep.subr.mxu0 0.0
      %239 = vmatpush1.msra.mxu0 0.0
      %240 = vmatprep.subr.mxu0 0.0
      %241 = vmatpush1.msra.mxu0 0.0
      %242 = vmatprep.subr.mxu0 0.0
      %243 = vmatpush1.msra.mxu0 0.0
      %244 = vmatprep.subr.mxu0 0.0
      %245 = vmatpush1.msra.mxu0 0.0
      %246 = vmatprep.subr.mxu0 0.0
      %247 = vmatpush1.msra.mxu0 0.0
      %248 = vmatprep.subr.mxu0 0.0
      %249 = vmatpush1.msra.mxu0 0.0
      %250 = vmatprep.mubr.f32.mxu0 0.0
      %251 = vmatmul.mubr.f32.gmra.mrb[0].mxu0 %v181
      %v252 = vpop.f32.mrb[0].mxu0
      %v253 = vadd.f32 0.0, %v252
      %v254 = vpop.f32.mrb[0].mxu0
      %255 = vmatprep.mubr.f32.mxu0 0.0
      %256 = vmatmul.mubr.f32.gmra.mrb[0].mxu0 %v184
      %v257 = vpop.f32.mrb[0].mxu0
      %v258 = vadd.f32 0.0, %v257
      %v259 = vpop.f32.mrb[0].mxu0
      %260 = vdwg.mxu0
      %s261 = scalar_lea.vmem [#allocation2], 32
      %262 = vst.msk [vmem:[%s261] sm:$0xff] %vm167, %v253
      %263 = vst.msk [vmem:[%s261 + $0x8] sm:$0xff] %vm167, %v258
      %v264 = vld [vmem:[%s261] sm:$0xff]
      %v265 = vld [vmem:[%s261 + $0x8] sm:$0xff]
      %v266 = vld [vmem:[%s141] sm:$0xff]
      %v267 = vld [vmem:[%s141 + $0x8] sm:$0xff]
      %v269 = vsel %vm167, %v264, 0
      %v272 = vsel %vm167, %v265, 0
      %274 = vmatprep.subr.mxu0 0.0
      %275 = vmatpush1.msra.mxu0 %v266
      %276 = vmatprep.subr.mxu0 0.0
      %277 = vmatpush1.msra.mxu0 %v267
      %278 = vmatprep.subr.mxu0 0.0
      %279 = vmatpush1.msra.mxu0 0.0
      %280 = vmatprep.subr.mxu0 0.0
      %281 = vmatpush1.msra.mxu0 0.0
      %282 = vmatprep.subr.mxu0 0.0
      %283 = vmatpush1.msra.mxu0 0.0
      %284 = vmatprep.subr.mxu0 0.0
      %285 = vmatpush1.msra.mxu0 0.0
      %286 = vmatprep.subr.mxu0 0.0
      %287 = vmatpush1.msra.mxu0 0.0
      %288 = vmatprep.subr.mxu0 0.0
      %289 = vmatpush1.msra.mxu0 0.0
      %290 = vmatprep.subr.mxu0 0.0
      %291 = vmatpush1.msra.mxu0 0.0
      %292 = vmatprep.subr.mxu0 0.0
      %293 = vmatpush1.msra.mxu0 0.0
      %294 = vmatprep.subr.mxu0 0.0
      %295 = vmatpush1.msra.mxu0 0.0
      %296 = vmatprep.subr.mxu0 0.0
      %297 = vmatpush1.msra.mxu0 0.0
      %298 = vmatprep.subr.mxu0 0.0
      %299 = vmatpush1.msra.mxu0 0.0
      %300 = vmatprep.subr.mxu0 0.0
      %301 = vmatpush1.msra.mxu0 0.0
      %302 = vmatprep.subr.mxu0 0.0
      %303 = vmatpush1.msra.mxu0 0.0
      %304 = vmatprep.subr.mxu0 0.0
      %305 = vmatpush1.msra.mxu0 0.0
      %306 = vmatprep.subr.mxu0 0.0
      %307 = vmatpush1.msra.mxu0 0.0
      %308 = vmatprep.subr.mxu0 0.0
      %309 = vmatpush1.msra.mxu0 0.0
      %310 = vmatprep.subr.mxu0 0.0
      %311 = vmatpush1.msra.mxu0 0.0
      %312 = vmatprep.subr.mxu0 0.0
      %313 = vmatpush1.msra.mxu0 0.0
      %314 = vmatprep.subr.mxu0 0.0
      %315 = vmatpush1.msra.mxu0 0.0
      %316 = vmatprep.subr.mxu0 0.0
      %317 = vmatpush1.msra.mxu0 0.0
      %318 = vmatprep.subr.mxu0 0.0
      %319 = vmatpush1.msra.mxu0 0.0
      %320 = vmatprep.subr.mxu0 0.0
      %321 = vmatpush1.msra.mxu0 0.0
      %322 = vmatprep.subr.mxu0 0.0
      %323 = vmatpush1.msra.mxu0 0.0
      %324 = vmatprep.subr.mxu0 0.0
      %325 = vmatpush1.msra.mxu0 0.0
      %326 = vmatprep.subr.mxu0 0.0
      %327 = vmatpush1.msra.mxu0 0.0
      %328 = vmatprep.subr.mxu0 0.0
      %329 = vmatpush1.msra.mxu0 0.0
      %330 = vmatprep.subr.mxu0 0.0
      %331 = vmatpush1.msra.mxu0 0.0
      %332 = vmatprep.subr.mxu0 0.0
      %333 = vmatpush1.msra.mxu0 0.0
      %334 = vmatprep.subr.mxu0 0.0
      %335 = vmatpush1.msra.mxu0 0.0
      %336 = vmatprep.subr.mxu0 0.0
      %337 = vmatpush1.msra.mxu0 0.0
      %338 = vmatprep.mubr.f32.mxu0 0.0
      %339 = vmatmul.mubr.f32.gmra.mrb[0].mxu0 %v269
      %v340 = vpop.f32.mrb[0].mxu0
      %v341 = vadd.f32 0.0, %v340
      %v342 = vpop.f32.mrb[0].mxu0
      %343 = vmatprep.mubr.f32.mxu0 0.0
      %344 = vmatmul.mubr.f32.gmra.mrb[0].mxu0 %v272
      %v345 = vpop.f32.mrb[0].mxu0
      %v346 = vadd.f32 0.0, %v345
      %v347 = vpop.f32.mrb[0].mxu0
      %348 = vdwg.mxu0
      %s349 = scalar_lea.vmem [#allocation2], 48
      %350 = vst.msk [vmem:[%s349] sm:$0xff] %vm167, %v341
      %351 = vst.msk [vmem:[%s349 + $0x8] sm:$0xff] %vm167, %v346
      %s352 = smul.u32 %s28, 128
      %s353 = smul.u32 %s28, 32
      loop: start=0, step=1, limit=32
      $region25: #{metapath_rrwp_forward.5} parent=23 // loop_pre_header
        _
      $region26: #{metapath_rrwp_forward.5} parent=23 // loop_header
        %s355 = sphi 0, %s359
        %p356 = scmp.ge.s32.totalorder %s355, 32
      $region27: #{metapath_rrwp_forward.5} parent=23 // loop_header_branch
        %358 = sbr.rel (%p356) target = $region31
      $region28: #{metapath_rrwp_forward.5} parent=23 // loop_body
        %s360 = sadd.s32 %s353, %s355
        %s361 = sld [smem:[#allocation5 + %s360]]
        %v362 = vstv %s361
        %s363 = sadd.s32 %s352, %s355
        %s364 = sld [smem:[#allocation4 + %s363]]
        %v365 = vld [vmem:[#allocation2] sm:$0xff]
        %v366 = vld [vmem:[#allocation2 + $0x8] sm:$0xff]
        %v367 = vstv %s364
        %v368 = vmul.f32 %v367, %v365
        %v369 = vmul.f32 %v367, %v366
        %v370 = vadd.f32 %v362, %v368
        %v371 = vadd.f32 %v362, %v369
        %s372 = sadd.s32 %s352, 32
        %s373 = sadd.s32 %s372, %s355
        %s374 = sld [smem:[#allocation4 + %s373]]
        %v375 = vld [vmem:[%s173] sm:$0xff]
        %v376 = vld [vmem:[%s173 + $0x8] sm:$0xff]
        %v377 = vstv %s374
        %v378 = vmul.f32 %v377, %v375
        %v379 = vmul.f32 %v377, %v376
        %v380 = vadd.f32 %v370, %v378
        %v381 = vadd.f32 %v371, %v379
        %s382 = sadd.s32 %s352, 64
        %s383 = sadd.s32 %s382, %s355
        %s384 = sld [smem:[#allocation4 + %s383]]
        %v385 = vld [vmem:[%s261] sm:$0xff]
        %v386 = vld [vmem:[%s261 + $0x8] sm:$0xff]
        %v387 = vstv %s384
        %v388 = vmul.f32 %v387, %v385
        %v389 = vmul.f32 %v387, %v386
        %v390 = vadd.f32 %v380, %v388
        %v391 = vadd.f32 %v381, %v389
        %s392 = sadd.s32 %s352, 96
        %s393 = sadd.s32 %s392, %s355
        %s394 = sld [smem:[#allocation4 + %s393]]
        %v395 = vld [vmem:[%s349] sm:$0xff]
        %v396 = vld [vmem:[%s349 + $0x8] sm:$0xff]
        %v397 = vstv %s394
        %v398 = vmul.f32 %v397, %v395
        %v399 = vmul.f32 %v397, %v396
        %v400 = vadd.f32 %v390, %v398
        %v401 = vadd.f32 %v391, %v399
        %s402 = smul.u32 %s355, 16
        %s403 = scalar_lea.vmem %s150, %s402
        %404 = vst.msk [vmem:[%s403] sm:$0xff] %vm167, %v400
        %405 = vst.msk [vmem:[%s403 + $0x8] sm:$0xff] %vm167, %v401
      $region29: #{metapath_rrwp_forward.5} parent=23 // loop_footer
        %s359 = sadd.s32 1, %s355
      $region30: #{metapath_rrwp_forward.5} parent=23 // loop_footer_branch
        %354 = sbr.rel target = $region26
      $region31: #{metapath_rrwp_forward.5} parent=23 // loop_exit
        _
      %s406 = smul.u32 2, %s29
      %p407 = scmp.lt.s32.totalorder %s28, 1
      %s408 = scalar_select %p407, %s28, 1
      %p409 = scmp.lt.s32.totalorder %s406, 1
      %s410 = scalar_select %p409, %s406, 1
      %s411 = smul.addr %s408, 64
      %s412 = sadd.s32 %s410, %s411
      %s413 = smul.addr %s412, 8
      %s414 = scalar_lea.vmem %s3, %s413
      // Predicated region
      $region32: #{metapath_rrwp_forward.5} parent=23 // pred_check
        %p415 = pneg %p82
      $region33: #{metapath_rrwp_forward.5} parent=23 // pred_check_branch
        %417 = sbr.rel (%p415) target = $region35
      $region34: #{metapath_rrwp_forward.5} parent=23 // pred_region
        %s418 = smul.u32 2, %s29
      $region35: #{metapath_rrwp_forward.5} parent=23 // pred_fallthru
        _
    $region24: #{metapath_rrwp_forward.5} parent=5 // pred_fallthru
      _
    %p419 = scmp.le.s32.totalorder 2, %s19
    // Predicated region
    $region36: #{metapath_rrwp_forward.5} parent=5 // pred_check
      %p420 = pneg %p419
    $region37: #{metapath_rrwp_forward.5} parent=5 // pred_check_branch
      %422 = sbr.rel (%p420) target = $region39
    $region38: #{metapath_rrwp_forward.5} parent=5 // pred_region
      %s423 = ssub.s32 %s19, 2
      // Predicated region
      $region40: #{metapath_rrwp_forward.5} parent=38 // pred_check
        %p424 = pneg %p88
      $region41: #{metapath_rrwp_forward.5} parent=38 // pred_check_branch
        %426 = sbr.rel (%p424) target = $region43
      $region42: #{metapath_rrwp_forward.5} parent=38 // pred_region
        %s427 = smul.u32 2, %s31
        %p428 = scmp.lt.s32.totalorder %s30, 1
        %s429 = scalar_select %p428, %s30, 1
        %p430 = scmp.lt.s32.totalorder %s427, 1
        %s431 = scalar_select %p430, %s427, 1
        %s432 = smul.addr %s429, 64
        %s433 = sadd.s32 %s431, %s432
        %s434 = smul.addr %s433, 8
        %s435 = scalar_lea.vmem %s3, %s434
      $region43: #{metapath_rrwp_forward.5} parent=38 // pred_fallthru
        _
    $region39: #{metapath_rrwp_forward.5} parent=5 // pred_fallthru
      _
  $region6: #{metapath_rrwp_forward.5} parent=0 // loop_footer
    %s23 = sadd.s32 1, %s19
  $region7: #{metapath_rrwp_forward.5} parent=0 // loop_footer_branch
    %18 = sbr.rel target = $region3
  $region8: #{metapath_rrwp_forward.5} parent=0 // loop_exit
    _

</llo_original>
